<compile_context>
chip_gen: v6e
topology: v6e:2x2x1
jax: 0.10.0
libtpu: 0.0.40
codegen_flags: <defaults>
</compile_context>

<pallas_src>
import functools

import jax
import jax.numpy as jnp
from jax.experimental import pallas as pl
from jax.experimental.pallas import tpu as pltpu


def _round_up(x, m):
    return ((x + m - 1) // m) * m


# -----------------------------------------------------------------------------
# Classifier head kernel (source path):
#   cls_state -> bottleneck Linear -> fc Linear -> softmax
# Class dim is padded to 256 lanes (padded logits get a -1e30 bias so their
# softmax weight underflows to exactly 0); argmax/max done in the wrapper.
# -----------------------------------------------------------------------------
def cls_kernel(x_ref, wb_ref, bb_ref, wf_ref, bf_ref, probs_ref):
    # bf16 x bf16 matmuls with f32 accumulation on the MXU; bias/softmax in f32.
    x = x_ref[...].astype(jnp.bfloat16)
    h = jnp.dot(x, wb_ref[...], preferred_element_type=jnp.float32) + bb_ref[...]
    logits = (jnp.dot(h.astype(jnp.bfloat16), wf_ref[...],
                      preferred_element_type=jnp.float32) + bf_ref[...])
    # softmax over last dim; padded lanes carry -1e30 bias -> contribute 0
    m = jnp.max(logits, axis=-1, keepdims=True)
    e = jnp.exp(logits - m)
    probs_ref[...] = (e / jnp.sum(e, axis=-1, keepdims=True)).astype(probs_ref.dtype)


def classifier_forward(cls_state, wb, bb, wf, bf):
    B, H = cls_state.shape
    BN = wb.shape[1]
    C = wf.shape[1]
    # Pad class dim to 256 lanes: lane-dense probs store + full MXU N on v6e/v7x.
    Cp = _round_up(max(C, 256), 128)

    wb_bf = wb.astype(jnp.bfloat16)
    bb2 = bb.reshape(1, BN)
    # Pad class dim: zero weights + very negative bias so padded softmax = 0.
    wf_p = jnp.pad(wf, ((0, 0), (0, Cp - C))).astype(jnp.bfloat16)
    bf_p = jnp.pad(bf.reshape(1, C), ((0, 0), (0, Cp - C)),
                   constant_values=-1e30)

    full = lambda shape: pl.BlockSpec(shape, lambda i: (0,) * len(shape))
    probs_p = pl.pallas_call(
        cls_kernel,
        out_shape=jax.ShapeDtypeStruct((B, Cp), jnp.float32),
        grid=(1,),
        in_specs=[full((B, H)), full((H, BN)), full((1, BN)),
                  full((BN, Cp)), full((1, Cp))],
        out_specs=full((B, Cp)),
        compiler_params=pltpu.CompilerParams(
            dimension_semantics=("arbitrary",)),
    )(cls_state, wb_bf, bb2, wf_p, bf_p)

    probs = probs_p[:, :C]
    # argmax / max are trivial post-processing on a (B, C) array; doing them in
    # XLA keeps the kernel outputs lane-dense (no width-1 masked stores).
    return {
        "predictions": jnp.argmax(probs, axis=-1).astype(jnp.int32),
        "logits": probs,
        "max_logits": jnp.max(probs, axis=-1),
    }


# -----------------------------------------------------------------------------
# MLM head kernel (target path):
#   hidden -> dense Linear -> GELU(exact) -> LayerNorm -> decoder Linear + bias
# Grid = (BS blocks, vocab tiles).  The dense+gelu+layernorm is computed once
# per BS block (at the first vocab tile) into a bf16 VMEM scratch; the decoder
# matmul streams bf16 weight tiles and accumulates in f32 on the MXU.
#
# NOTE (correctness invariant): hn_ref is written at j==0 and read for all j>0
# of the same BS block.  This relies on (a) the vocab axis being the innermost
# grid axis and marked "arbitrary" (sequential per core) and (b) scratch being
# per-core, so under megacore sharding of the BS axis each core recomputes hn
# at its own j==0.  Do NOT reorder the grid or mark the vocab axis "parallel".
# -----------------------------------------------------------------------------
def mlm_kernel(h_ref, wd_ref, bd_ref, g_ref, b_ref, wdec_ref, bdec_ref,
               out_ref, hn_ref, *, eps):
    j = pl.program_id(1)   # vocab-tile index (inner, "arbitrary")

    def decode(hn_bf16):
        return (jnp.dot(hn_bf16, wdec_ref[...],
                        preferred_element_type=jnp.float32)
                + bdec_ref[...]).astype(out_ref.dtype)

    @pl.when(j == 0)
    def _():
        # dense: bf16 x bf16 -> f32 accumulate; GELU / LayerNorm math in f32.
        y = jnp.dot(h_ref[...], wd_ref[...],
                    preferred_element_type=jnp.float32) + bd_ref[...]
        # exact GELU (torch.nn.GELU default): 0.5 * x * (1 + erf(x / sqrt(2)))
        y = 0.5 * y * (1.0 + jax.lax.erf(y * jnp.float32(0.7071067811865476)))
        # LayerNorm over the hidden dim
        mu = jnp.mean(y, axis=-1, keepdims=True)
        var = jnp.mean((y - mu) * (y - mu), axis=-1, keepdims=True)
        y = (y - mu) * jax.lax.rsqrt(var + jnp.float32(eps))
        y = y * g_ref[...] + b_ref[...]
        yb = y.astype(hn_ref.dtype)        # bf16 for the streaming matmul
        hn_ref[...] = yb                   # cached for j > 0
        out_ref[...] = decode(yb)          # use fresh value; skip VMEM re-load

    @pl.when(j > 0)
    def _():
        out_ref[...] = decode(hn_ref[...])


def mlm_forward(hidden_states, wd, bd, gamma, beta, wdec, bdec, *, eps=1e-12,
                vocab_tile=1024, bs_tile=1024, out_dtype=jnp.bfloat16):
    B, S, H = hidden_states.shape
    V = wdec.shape[1]
    BS = B * S

    # --- BS tiling.  Big BS tiles minimize decoder-weight re-streaming from
    # HBM (wdec traffic = n_bs * H * Vp * 2B).  SUB=16 keeps bf16 sublane
    # packing aligned for the bf16 hidden input and bf16 logits output.
    SUB = 16
    BS16 = _round_up(BS, SUB)
    bt = _round_up(min(bs_tile, BS16), SUB)
    # v7x megacore guard: if one tile covers everything, halve it so the
    # "parallel" BS axis has >= 2 blocks and both TensorCores get work.
    if BS16 // bt < 2 and BS16 >= 2 * SUB:
        bt = _round_up((BS16 + 1) // 2, SUB)
    BSp = _round_up(BS16, bt)

    # --- Vocab tiling: lane-dense tiles amortize the ~0.35us per-grid-step
    # overhead and give wide contiguous DMAs / unmasked stores.  Padding V up
    # to a multiple of vt wastes at most vt-128 columns (<1% at BERT scale).
    vt = min(vocab_tile, _round_up(V, 128))
    Vp = _round_up(V, vt)

    # bf16 streaming of the big operands: halves HBM traffic and uses the fast
    # MXU path; accumulation stays f32 (preferred_element_type).
    h2 = hidden_states.reshape(BS, H).astype(jnp.bfloat16)
    if BSp != BS:
        h2 = jnp.pad(h2, ((0, BSp - BS), (0, 0)))
    wd_bf = wd.astype(jnp.bfloat16)
    wdec_bf = wdec.astype(jnp.bfloat16)
    bdec2 = bdec.reshape(1, V)
    if Vp != V:
        wdec_bf = jnp.pad(wdec_bf, ((0, 0), (0, Vp - V)))
        bdec2 = jnp.pad(bdec2, ((0, 0), (0, Vp - V)))
    bd2 = bd.reshape(1, H).astype(jnp.float32)
    g2 = gamma.reshape(1, H).astype(jnp.float32)
    b2 = beta.reshape(1, H).astype(jnp.float32)

    n_bs = BSp // bt
    n_v = Vp // vt
    out_bytes = jnp.dtype(out_dtype).itemsize

    # VMEM budget (generation-aware): double-buffer only the blocks whose index
    # changes across the grid (hidden over i; wdec/bdec/out over j); wd and the
    # small vectors have constant index maps (single copy); + hn scratch.
    est = (2 * bt * H * 2                       # hidden block (bf16)
           + H * H * 2 + 3 * H * 4              # wd (bf16) + bd/gamma/beta (f32)
           + 2 * (H * vt * 2 + vt * 4)          # wdec (bf16) + bdec (f32)
           + 2 * bt * vt * out_bytes            # output tile
           + bt * H * 2)                        # hn scratch (bf16)
    try:
        vmem_cap = int(pltpu.get_tpu_info().vmem_capacity_bytes)
    except Exception:
        vmem_cap = 64 * 1024 * 1024             # conservative (v7x per-TC)
    cap = int(0.70 * vmem_cap)
    vmem_limit = min(max(int(1.5 * est), 32 * 1024 * 1024), cap)

    logits = pl.pallas_call(
        functools.partial(mlm_kernel, eps=eps),
        out_shape=jax.ShapeDtypeStruct((BSp, Vp), out_dtype),
        grid=(n_bs, n_v),
        in_specs=[
            pl.BlockSpec((bt, H), lambda i, j: (i, 0)),        # hidden block (bf16)
            pl.BlockSpec((H, H), lambda i, j: (0, 0)),         # dense weight (bf16)
            pl.BlockSpec((1, H), lambda i, j: (0, 0)),         # dense bias
            pl.BlockSpec((1, H), lambda i, j: (0, 0)),         # layernorm gamma
            pl.BlockSpec((1, H), lambda i, j: (0, 0)),         # layernorm beta
            pl.BlockSpec((H, vt), lambda i, j: (0, j)),        # decoder weight (bf16)
            pl.BlockSpec((1, vt), lambda i, j: (0, j)),        # decoder bias
        ],
        out_specs=pl.BlockSpec((bt, vt), lambda i, j: (i, j)),
        scratch_shapes=[pltpu.VMEM((bt, H), jnp.bfloat16)],    # per-BS-block hn
        compiler_params=pltpu.CompilerParams(
            # BS blocks are independent -> "parallel" (v7x 2-TC sharding);
            # vocab axis must stay sequential for the hn scratch reuse.
            dimension_semantics=("parallel", "arbitrary"),
            vmem_limit_bytes=vmem_limit),
    )(h2, wd_bf, bd2, g2, b2, wdec_bf, bdec2)

    logits = logits[:BS, :V].reshape(B, S, V)
    return {"logits": logits}


# -----------------------------------------------------------------------------
# UDALM forward (heads only; backbone replaced by a provided last_hidden_state)
# -----------------------------------------------------------------------------
def udalm_forward(last_hidden_state, params, *, embeddings_only=False,
                  is_source=True, vocab_tile=1024, bs_tile=1024,
                  mlm_out_dtype=jnp.bfloat16):
    cls_state = last_hidden_state[:, 0, :]
    if embeddings_only:
        return cls_state
    if is_source:
        return classifier_forward(cls_state,
                                  params["cls_wb"], params["cls_bb"],
                                  params["cls_wf"], params["cls_bf"])
    return mlm_forward(last_hidden_state,
                       params["mlm_wd"], params["mlm_bd"],
                       params["mlm_gamma"], params["mlm_beta"],
                       params["mlm_wdec"], params["mlm_bdec"],
                       eps=params["layer_norm_eps"],
                       vocab_tile=vocab_tile, bs_tile=bs_tile,
                       out_dtype=mlm_out_dtype)


if __name__ == "__main__":
    # Small shapes consistent with the module
    B, S, H = 2, 16, 32         # batch, seq, hidden
    BN = 256                    # bottleneck dim (module default)
    C = 4                       # num_class
    V = 1000                    # vocab size (exercises vocab tiling + padding)

    key = jax.random.PRNGKey(0)
    ks = jax.random.split(key, 8)

    # Synthetic "last_hidden_state" standing in for the backbone output.
    last_hidden_state = jax.random.normal(ks[0], (B, S, H), jnp.float32)

    # Deterministic parameter init (shapes per module __init__).
    params = {
        # CLS head
        "cls_wb": 0.05 * jax.random.normal(ks[1], (H, BN), jnp.float32),
        "cls_bb": jnp.zeros((BN,), jnp.float32),
        "cls_wf": 0.05 * jax.random.normal(ks[2], (BN, C), jnp.float32),
        "cls_bf": jnp.zeros((C,), jnp.float32),
        # MLM head
        "mlm_wd": 0.05 * jax.random.normal(ks[3], (H, H), jnp.float32),
        "mlm_bd": jnp.zeros((H,), jnp.float32),
        "mlm_gamma": jnp.ones((H,), jnp.float32),
        "mlm_beta": jnp.zeros((H,), jnp.float32),
        "mlm_wdec": 0.05 * jax.random.normal(ks[4], (H, V), jnp.float32),
        "mlm_bdec": jnp.zeros((V,), jnp.float32),
        "layer_norm_eps": 1e-12,
    }

    # ---- Source path (classifier) ----
    src_out = udalm_forward(last_hidden_state, params, is_source=True)
    jax.block_until_ready(src_out)
    assert src_out["logits"].shape == (B, C)
    assert src_out["predictions"].shape == (B,)
    assert src_out["max_logits"].shape == (B,)

    # Reference check (pure JAX, f32) — bf16 weight streaming => bf16 tolerance.
    cls_state = last_hidden_state[:, 0, :]
    ref_h = cls_state @ params["cls_wb"] + params["cls_bb"]
    ref_probs = jax.nn.softmax(ref_h @ params["cls_wf"] + params["cls_bf"], axis=-1)
    assert jnp.allclose(src_out["logits"], ref_probs, atol=1e-2, rtol=1e-2)

    # ---- Target path (MLM head) ----
    # Small tiles here exercise both grid axes (2 BS blocks x 4 vocab tiles),
    # including the hn scratch-reuse path at j > 0 and vocab padding 1000->1024.
    tgt_out = udalm_forward(last_hidden_state, params, is_source=False,
                            vocab_tile=256, bs_tile=16)
    jax.block_until_ready(tgt_out)
    assert tgt_out["logits"].shape == (B, S, V)

    # Reference check (pure JAX, f32) — bf16 activations/weights/logits =>
    # loose tolerance.
    x = last_hidden_state.reshape(-1, H)
    y = x @ params["mlm_wd"] + params["mlm_bd"]
    y = 0.5 * y * (1.0 + jax.lax.erf(y * 0.7071067811865476))
    mu = y.mean(-1, keepdims=True)
    var = ((y - mu) ** 2).mean(-1, keepdims=True)
    y = (y - mu) * jax.lax.rsqrt(var + params["layer_norm_eps"])
    y = y * params["mlm_gamma"] + params["mlm_beta"]
    ref_logits = (y @ params["mlm_wdec"] + params["mlm_bdec"]).reshape(B, S, V)
    assert jnp.allclose(tgt_out["logits"].astype(jnp.float32), ref_logits,
                        atol=5e-2, rtol=5e-2)

    # ---- embeddings_only path ----
    emb = udalm_forward(last_hidden_state, params, embeddings_only=True)
    jax.block_until_ready(emb)
    assert emb.shape == (B, H)

    print("KERNEL_OK")
</pallas_src>

<mosaic_0001>
module attributes {stable_mosaic.version = 11 : i64} {
  func.func @cls_kernel(%arg0: i32, %arg1: memref<2x32xf32, #tpu.memory_space<vmem>>, %arg2: memref<32x256xbf16, #tpu.memory_space<vmem>>, %arg3: memref<1x256xf32, #tpu.memory_space<vmem>>, %arg4: memref<256x256xbf16, #tpu.memory_space<vmem>>, %arg5: memref<1x256xf32, #tpu.memory_space<vmem>>, %arg6: memref<2x256xf32, #tpu.memory_space<vmem>>) attributes {dimension_semantics = [#tpu.dimension_semantics<arbitrary>], iteration_bounds = array<i64: 1>, scalar_prefetch = 0 : i64, scratch_operands = 0 : i64, tpu.core_type = #tpu.core_type<tc>, window_params = [{pipeline_mode = #tpu.pipeline_mode<synchronous>, transform_indices = @transform_0, window_bounds = array<i64: 2, 32>}, {pipeline_mode = #tpu.pipeline_mode<synchronous>, transform_indices = @transform_1, window_bounds = array<i64: 32, 256>}, {pipeline_mode = #tpu.pipeline_mode<synchronous>, transform_indices = @transform_2, window_bounds = array<i64: 1, 256>}, {pipeline_mode = #tpu.pipeline_mode<synchronous>, transform_indices = @transform_3, window_bounds = array<i64: 256, 256>}, {pipeline_mode = #tpu.pipeline_mode<synchronous>, transform_indices = @transform_4, window_bounds = array<i64: 1, 256>}, {pipeline_mode = #tpu.pipeline_mode<synchronous>, transform_indices = @transform_5, window_bounds = array<i64: 2, 256>}]} {
    %c0 = arith.constant 0 : index
    %c0_0 = arith.constant 0 : index
    %0 = vector.load %arg1[%c0, %c0_0] : memref<2x32xf32, #tpu.memory_space<vmem>>, vector<2x32xf32>
    %1 = arith.truncf %0 : vector<2x32xf32> to vector<2x32xbf16>
    %c0_1 = arith.constant 0 : index
    %c0_2 = arith.constant 0 : index
    %2 = vector.load %arg2[%c0_1, %c0_2] : memref<32x256xbf16, #tpu.memory_space<vmem>>, vector<32x256xbf16>
    %cst = arith.constant dense<0.000000e+00> : vector<2x256xf32>
    %3 = tpu.matmul %1, %2, %cst {dimension_numbers = #tpu.dot_dimension_numbers<[1], [0], [0], [1], [0, 0, 1, 1], [], []>} : vector<2x32xbf16>, vector<32x256xbf16>, vector<2x256xf32> -> vector<2x256xf32>
    %c0_3 = arith.constant 0 : index
    %c0_4 = arith.constant 0 : index
    %4 = vector.load %arg3[%c0_3, %c0_4] : memref<1x256xf32, #tpu.memory_space<vmem>>, vector<1x256xf32>
    %5 = vector.broadcast %4 : vector<1x256xf32> to vector<2x256xf32>
    %6 = arith.addf %3, %5 : vector<2x256xf32>
    %7 = arith.truncf %6 : vector<2x256xf32> to vector<2x256xbf16>
    %c0_5 = arith.constant 0 : index
    %c0_6 = arith.constant 0 : index
    %8 = vector.load %arg4[%c0_5, %c0_6] : memref<256x256xbf16, #tpu.memory_space<vmem>>, vector<256x256xbf16>
    %cst_7 = arith.constant dense<0.000000e+00> : vector<2x256xf32>
    %9 = tpu.matmul %7, %8, %cst_7 {dimension_numbers = #tpu.dot_dimension_numbers<[1], [0], [0], [1], [0, 0, 1, 1], [], []>} : vector<2x256xbf16>, vector<256x256xbf16>, vector<2x256xf32> -> vector<2x256xf32>
    %c0_8 = arith.constant 0 : index
    %c0_9 = arith.constant 0 : index
    %10 = vector.load %arg5[%c0_8, %c0_9] : memref<1x256xf32, #tpu.memory_space<vmem>>, vector<1x256xf32>
    %11 = vector.broadcast %10 : vector<1x256xf32> to vector<2x256xf32>
    %12 = arith.addf %9, %11 : vector<2x256xf32>
    %cst_10 = arith.constant dense<0xFF800000> : vector<2xf32>
    %13 = vector.multi_reduction <maximumf>, %12, %cst_10 [1] : vector<2x256xf32> to vector<2xf32>
    %14 = vector.shape_cast %13 : vector<2xf32> to vector<2x1xf32>
    %15 = vector.broadcast %14 : vector<2x1xf32> to vector<2x256xf32>
    %16 = arith.subf %12, %15 : vector<2x256xf32>
    %17 = math.exp %16 : vector<2x256xf32>
    %cst_11 = arith.constant dense<0.000000e+00> : vector<2xf32>
    %18 = vector.multi_reduction <add>, %17, %cst_11 [1] : vector<2x256xf32> to vector<2xf32>
    %19 = vector.shape_cast %18 : vector<2xf32> to vector<2x1xf32>
    %20 = vector.broadcast %19 : vector<2x1xf32> to vector<2x256xf32>
    %21 = arith.divf %17, %20 : vector<2x256xf32>
    %c0_12 = arith.constant 0 : index
    %c0_13 = arith.constant 0 : index
    %22 = vector.load %arg6[%c0_12, %c0_13] : memref<2x256xf32, #tpu.memory_space<vmem>>, vector<2x256xf32>
    tpu.vector_store %arg6[%c0_12, %c0_13], %21 {strides = array<i32>} : memref<2x256xf32, #tpu.memory_space<vmem>>, vector<2x256xf32>,
    return
  }
  func.func @transform_0(%arg0: i32) -> (i32, i32) {
    %c0_i32 = arith.constant 0 : i32
    %c0_i32_0 = arith.constant 0 : i32
    %c0_i32_1 = arith.constant 0 : i32
    return %c0_i32, %c0_i32_0 : i32, i32
  }
  func.func @transform_1(%arg0: i32) -> (i32, i32) {
    %c0_i32 = arith.constant 0 : i32
    %c0_i32_0 = arith.constant 0 : i32
    %c0_i32_1 = arith.constant 0 : i32
    return %c0_i32, %c0_i32_0 : i32, i32
  }
  func.func @transform_2(%arg0: i32) -> (i32, i32) {
    %c0_i32 = arith.constant 0 : i32
    %c0_i32_0 = arith.constant 0 : i32
    %c0_i32_1 = arith.constant 0 : i32
    return %c0_i32, %c0_i32_0 : i32, i32
  }
  func.func @transform_3(%arg0: i32) -> (i32, i32) {
    %c0_i32 = arith.constant 0 : i32
    %c0_i32_0 = arith.constant 0 : i32
    %c0_i32_1 = arith.constant 0 : i32
    return %c0_i32, %c0_i32_0 : i32, i32
  }
  func.func @transform_4(%arg0: i32) -> (i32, i32) {
    %c0_i32 = arith.constant 0 : i32
    %c0_i32_0 = arith.constant 0 : i32
    %c0_i32_1 = arith.constant 0 : i32
    return %c0_i32, %c0_i32_0 : i32, i32
  }
  func.func @transform_5(%arg0: i32) -> (i32, i32) {
    %c0_i32 = arith.constant 0 : i32
    %c0_i32_0 = arith.constant 0 : i32
    %c0_i32_1 = arith.constant 0 : i32
    return %c0_i32, %c0_i32_0 : i32, i32
  }
}

</mosaic_0001>

<llo_original>
// kernel: tpu_custom_call.1
$region0: #{tpu_custom_call.1}
  #allocation0 [shape = 'u32[]', space=smem, size = 0x4, offset = 0x4, fixed_abs, tag = 'smem constant byte address 0x4 - core index']
  #allocation1 [shape = 'u32[144,128]{1,0:T(1,128)}', space=vmem, size = 0x12000, scoped, tag = 'internal scratch']
  %s0 = inlined_call_operand.hbm [shape: f32[2,32], index: 0, kind: input, shape index: {}]
  %s1 = inlined_call_operand.hbm [shape: bf16[32,256], index: 1, kind: input, shape index: {}]
  %s2 = inlined_call_operand.vmem [shape: f32[1,256], index: 2, kind: input, shape index: {}]
  %s3 = inlined_call_operand.hbm [shape: bf16[256,256], index: 3, kind: input, shape index: {}]
  %s4 = inlined_call_operand.vmem [shape: f32[1,256], index: 4, kind: input, shape index: {}]
  %s5 = inlined_call_operand.hbm [shape: f32[2,256], index: 5, kind: output, shape index: {}]
  %s6 = sld [smem:[#allocation0]]
  $region42: #{tpu_custom_call.1} parent=0
    _
  %s8 = ssub.s32 1, %s6
  %s9 = scalar_select 0, %s8, %s6
  $region1: #{tpu_custom_call.1} parent=0
    #allocation2 [shape = 'u8[1024]{0}', space=vmem, size = 0x400, scoped, tag = 'input window, operand 0, single buffered']
    #allocation3 [shape = 's32[1]{0}', space=sflag, size = 0x4, scoped, tag = 'scoped memory for tpu_custom_call.1']
    #allocation4 [shape = 's32[1]{0}', space=sflag, size = 0x4, scoped, tag = 'scoped memory for tpu_custom_call.1']
    #allocation5 [shape = 'u8[16384]{0}', space=vmem, size = 0x4000, scoped, tag = 'input window, operand 1, single buffered']
    #allocation6 [shape = 's32[1]{0}', space=sflag, size = 0x4, scoped, tag = 'scoped memory for tpu_custom_call.1']
    #allocation7 [shape = 'u8[131072]{0}', space=vmem, size = 0x20000, scoped, tag = 'input window, operand 3, single buffered']
    #allocation8 [shape = 'u8[2048]{0}', space=vmem, size = 0x800, scoped, tag = 'output window, operand 0, single buffered']
    %10 = vsyncpa [#allocation3], 0
    %11 = vsyncpa [#allocation6], 0
    %12 = vsyncpa [#allocation4], 0
    // Predicated region
    $region2: #{tpu_custom_call.1} parent=1 // pred_check
      _
    $region3: #{tpu_custom_call.1} parent=1 // pred_check_branch
      %14 = sbr.rel (0) target = $region5
    $region4: #{tpu_custom_call.1} parent=1 // pred_region
      %s16 = ssub.s32 32, 32
      %17 = vsyncadd [#allocation3], %s16
      %s19 = sshll.u32 [#allocation2], 4
      %s20 = int_to_ptr.vmem [resolvable:$true] %s19
      %22 = dma.hbm_to_vmem [thread:$0]  %s0, 32, %s20, [#allocation3]
    $region5: #{tpu_custom_call.1} parent=1 // pred_fallthru
      _
    // Predicated region
    $region6: #{tpu_custom_call.1} parent=1 // pred_check
      _
    $region7: #{tpu_custom_call.1} parent=1 // pred_check_branch
      %24 = sbr.rel (0) target = $region9
    $region8: #{tpu_custom_call.1} parent=1 // pred_region
      %s26 = ssub.s32 512, 512
      %27 = vsyncadd [#allocation6], %s26
      %s28 = sshll.u32 [#allocation5], 4
      %s29 = int_to_ptr.vmem [resolvable:$true] %s28
      %34 = dma.hbm_to_vmem [thread:$0]  %s1, 512, %s29, [#allocation6], 128, 128, 8
    $region9: #{tpu_custom_call.1} parent=1 // pred_fallthru
      _
    // Predicated region
    $region10: #{tpu_custom_call.1} parent=1 // pred_check
      _
    $region11: #{tpu_custom_call.1} parent=1 // pred_check_branch
      %36 = sbr.rel (0) target = $region13
    $region12: #{tpu_custom_call.1} parent=1 // pred_region
      _
    $region13: #{tpu_custom_call.1} parent=1 // pred_fallthru
      _
    // Predicated region
    $region14: #{tpu_custom_call.1} parent=1 // pred_check
      _
    $region15: #{tpu_custom_call.1} parent=1 // pred_check_branch
      %38 = sbr.rel (0) target = $region17
    $region16: #{tpu_custom_call.1} parent=1 // pred_region
      %s40 = ssub.s32 4096, 4096
      %41 = vsyncadd [#allocation6], %s40
      %s42 = sshll.u32 [#allocation7], 4
      %s43 = int_to_ptr.vmem [resolvable:$true] %s42
      %48 = dma.hbm_to_vmem [thread:$0]  %s3, 4096, %s43, [#allocation6], 128, 128, 8
    $region17: #{tpu_custom_call.1} parent=1 // pred_fallthru
      _
    // Predicated region
    $region18: #{tpu_custom_call.1} parent=1 // pred_check
      _
    $region19: #{tpu_custom_call.1} parent=1 // pred_check_branch
      %50 = sbr.rel (0) target = $region21
    $region20: #{tpu_custom_call.1} parent=1 // pred_region
      _
    $region21: #{tpu_custom_call.1} parent=1 // pred_fallthru
      _
    // Predicated region
    $region22: #{tpu_custom_call.1} parent=1 // pred_check
      _
    $region23: #{tpu_custom_call.1} parent=1 // pred_check_branch
      %52 = sbr.rel (0) target = $region25
    $region24: #{tpu_custom_call.1} parent=1 // pred_region
      %53 = dma.done [#allocation3], 32
    $region25: #{tpu_custom_call.1} parent=1 // pred_fallthru
      _
    // Predicated region
    $region26: #{tpu_custom_call.1} parent=1 // pred_check
      _
    $region27: #{tpu_custom_call.1} parent=1 // pred_check_branch
      %55 = sbr.rel (0) target = $region29
    $region28: #{tpu_custom_call.1} parent=1 // pred_region
      %56 = dma.done [#allocation6], 512
    $region29: #{tpu_custom_call.1} parent=1 // pred_fallthru
      _
    // Predicated region
    $region30: #{tpu_custom_call.1} parent=1 // pred_check
      _
    $region31: #{tpu_custom_call.1} parent=1 // pred_check_branch
      %58 = sbr.rel (0) target = $region33
    $region32: #{tpu_custom_call.1} parent=1 // pred_region
      %59 = dma.done [#allocation6], 4096
    $region33: #{tpu_custom_call.1} parent=1 // pred_fallthru
      _
    %v61 = vld [vmem:[#allocation2] sm:$0x3]
    %v62 = vpack.c.bf16 %v61, %v61
    %v63 = vld [vmem:[#allocation5] sm:$0xff]
    %v64 = vld [vmem:[#allocation5 + $0x8] sm:$0xff]
    %v65 = vld [vmem:[#allocation5 + $0x10] sm:$0xff]
    %v66 = vld [vmem:[#allocation5 + $0x18] sm:$0xff]
    %v67 = vld [vmem:[%s2] sm:$0x3]
    %v69 = vlaneseq
    %v70 = vshrl.u32 %v69, 7
    %v71 = vsub.s32 0, %v70
    %v72 = vrot.slane %v67, %v71
    %v73 = vlaneseq
    %v74 = vshrl.u32 %v73, 7
    %v75 = vsub.s32 1, %v74
    %v76 = vrot.slane %v67, %v75
    %v83 = vunpack.c.l.b16 %v63
    %v84 = vunpack.c.h.b16 %v63
    %v85 = vunpack.c.l.b16 %v64
    %v86 = vunpack.c.h.b16 %v64
    %v87 = vunpack.c.l.b16 %v65
    %v88 = vunpack.c.h.b16 %v65
    %v89 = vunpack.c.l.b16 %v66
    %v90 = vunpack.c.h.b16 %v66
    %v91 = vpack.c.b16 %v85, %v83
    %v92 = vpack.c.b16 %v86, %v84
    %v93 = vpack.c.b16 %v89, %v87
    %v94 = vpack.c.b16 %v90, %v88
    %vm99 = vcmask 261120
    %v101 = vsel %vm99, %v62, 0
    %103 = vmatprep.subr.bf16.mxu0 0
    %104 = vmatpush1.bf16.msra.mxu0 0
    %105 = vmatprep.subr.bf16.mxu0 0
    %106 = vmatpush1.bf16.msra.mxu0 0
    %107 = vmatprep.subr.bf16.mxu0 0
    %108 = vmatpush1.bf16.msra.mxu0 0
    %109 = vmatprep.subr.bf16.mxu0 0
    %110 = vmatpush1.bf16.msra.mxu0 0
    %111 = vmatprep.subr.bf16.mxu0 0
    %112 = vmatpush1.bf16.msra.mxu0 0
    %113 = vmatprep.subr.bf16.mxu0 0
    %114 = vmatpush1.bf16.msra.mxu0 0
    %115 = vmatprep.subr.bf16.mxu0 %v94
    %116 = vmatpush1.bf16.msra.mxu0 %v93
    %117 = vmatprep.subr.bf16.mxu0 %v92
    %118 = vmatpush1.bf16.msra.mxu0 %v91
    %119 = vmatprep.subr.bf16.mxu0 0
    %120 = vmatpush2.bf16.msra.mxu0 0
    %121 = vmatprep.subr.bf16.mxu0 0
    %122 = vmatpush2.bf16.msra.mxu0 0
    %123 = vmatprep.subr.bf16.mxu0 0
    %124 = vmatpush2.bf16.msra.mxu0 0
    %125 = vmatprep.subr.bf16.mxu0 0
    %126 = vmatpush2.bf16.msra.mxu0 0
    %127 = vmatprep.subr.bf16.mxu0 0
    %128 = vmatpush2.bf16.msra.mxu0 0
    %129 = vmatprep.subr.bf16.mxu0 0
    %130 = vmatpush2.bf16.msra.mxu0 0
    %131 = vmatprep.subr.bf16.mxu0 0
    %132 = vmatpush2.bf16.msra.mxu0 0
    %133 = vmatprep.subr.bf16.mxu0 0
    %134 = vmatpush2.bf16.msra.mxu0 0
    %135 = vmatprep.mubr.bf16.mxu0 0
    %136 = vmatmul.mubr.bf16.gmra.mxu0 %v101
    %v137 = vpop.f32.mrf.mxu0
    %v138 = vadd.f32 %v72, %v137
    %v139 = vpop.f32.mrf.mxu0
    %v140 = vadd.f32 %v76, %v139
    %v141 = vpop.f32.mrf.mxu0
    %v142 = vpop.f32.mrf.mxu0
    %143 = vdwg.mxu0
    %v144 = vpack.c.bf16 %v138, %v138
    %v145 = vpack.c.bf16 %v140, %v140
    %v146 = vld [vmem:[#allocation7] sm:$0xff]
    %v147 = vld [vmem:[#allocation7 + $0x8] sm:$0xff]
    %v148 = vld [vmem:[#allocation7 + $0x10] sm:$0xff]
    %v149 = vld [vmem:[#allocation7 + $0x18] sm:$0xff]
    %v150 = vld [vmem:[#allocation7 + $0x20] sm:$0xff]
    %v151 = vld [vmem:[#allocation7 + $0x28] sm:$0xff]
    %v152 = vld [vmem:[#allocation7 + $0x30] sm:$0xff]
    %v153 = vld [vmem:[#allocation7 + $0x38] sm:$0xff]
    %v154 = vld [vmem:[#allocation7 + $0x40] sm:$0xff]
    %v155 = vld [vmem:[#allocation7 + $0x48] sm:$0xff]
    %v156 = vld [vmem:[#allocation7 + $0x50] sm:$0xff]
    %v157 = vld [vmem:[#allocation7 + $0x58] sm:$0xff]
    %v158 = vld [vmem:[#allocation7 + $0x60] sm:$0xff]
    %v159 = vld [vmem:[#allocation7 + $0x68] sm:$0xff]
    %v160 = vld [vmem:[#allocation7 + $0x70] sm:$0xff]
    %v161 = vld [vmem:[#allocation7 + $0x78] sm:$0xff]
    %v162 = vld [vmem:[#allocation7 + $0x80] sm:$0xff]
    %v163 = vld [vmem:[#allocation7 + $0x88] sm:$0xff]
    %v164 = vld [vmem:[#allocation7 + $0x90] sm:$0xff]
    %v165 = vld [vmem:[#allocation7 + $0x98] sm:$0xff]
    %v166 = vld [vmem:[#allocation7 + $0xa0] sm:$0xff]
    %v167 = vld [vmem:[#allocation7 + $0xa8] sm:$0xff]
    %v168 = vld [vmem:[#allocation7 + $0xb0] sm:$0xff]
    %v169 = vld [vmem:[#allocation7 + $0xb8] sm:$0xff]
    %v170 = vld [vmem:[#allocation7 + $0xc0] sm:$0xff]
    %v171 = vld [vmem:[#allocation7 + $0xc8] sm:$0xff]
    %v172 = vld [vmem:[#allocation7 + $0xd0] sm:$0xff]
    %v173 = vld [vmem:[#allocation7 + $0xd8] sm:$0xff]
    %v174 = vld [vmem:[#allocation7 + $0xe0] sm:$0xff]
    %v175 = vld [vmem:[#allocation7 + $0xe8] sm:$0xff]
    %v176 = vld [vmem:[#allocation7 + $0xf0] sm:$0xff]
    %v177 = vld [vmem:[#allocation7 + $0xf8] sm:$0xff]
    %v178 = vld [vmem:[%s4] sm:$0x3]
    %v180 = vlaneseq
    %v181 = vshrl.u32 %v180, 7
    %v182 = vsub.s32 0, %v181
    %v183 = vrot.slane %v178, %v182
    %v184 = vlaneseq
    %v185 = vshrl.u32 %v184, 7
    %v186 = vsub.s32 1, %v185
    %v187 = vrot.slane %v178, %v186
    %v222 = vunpack.c.l.b16 %v146
    %v223 = vunpack.c.h.b16 %v146
    %v224 = vunpack.c.l.b16 %v147
    %v225 = vunpack.c.h.b16 %v147
    %v226 = vunpack.c.l.b16 %v148
    %v227 = vunpack.c.h.b16 %v148
    %v228 = vunpack.c.l.b16 %v149
    %v229 = vunpack.c.h.b16 %v149
    %v230 = vunpack.c.l.b16 %v150
    %v231 = vunpack.c.h.b16 %v150
    %v232 = vunpack.c.l.b16 %v151
    %v233 = vunpack.c.h.b16 %v151
    %v234 = vunpack.c.l.b16 %v152
    %v235 = vunpack.c.h.b16 %v152
    %v236 = vunpack.c.l.b16 %v153
    %v237 = vunpack.c.h.b16 %v153
    %v238 = vunpack.c.l.b16 %v154
    %v239 = vunpack.c.h.b16 %v154
    %v240 = vunpack.c.l.b16 %v155
    %v241 = vunpack.c.h.b16 %v155
    %v242 = vunpack.c.l.b16 %v156
    %v243 = vunpack.c.h.b16 %v156
    %v244 = vunpack.c.l.b16 %v157
    %v245 = vunpack.c.h.b16 %v157
    %v246 = vunpack.c.l.b16 %v158
    %v247 = vunpack.c.h.b16 %v158
    %v248 = vunpack.c.l.b16 %v159
    %v249 = vunpack.c.h.b16 %v159
    %v250 = vunpack.c.l.b16 %v160
    %v251 = vunpack.c.h.b16 %v160
    %v252 = vunpack.c.l.b16 %v161
    %v253 = vunpack.c.h.b16 %v161
    %v254 = vunpack.c.l.b16 %v162
    %v255 = vunpack.c.h.b16 %v162
    %v256 = vunpack.c.l.b16 %v163
    %v257 = vunpack.c.h.b16 %v163
    %v258 = vunpack.c.l.b16 %v164
    %v259 = vunpack.c.h.b16 %v164
    %v260 = vunpack.c.l.b16 %v165
    %v261 = vunpack.c.h.b16 %v165
    %v262 = vunpack.c.l.b16 %v166
    %v263 = vunpack.c.h.b16 %v166
    %v264 = vunpack.c.l.b16 %v167
    %v265 = vunpack.c.h.b16 %v167
    %v266 = vunpack.c.l.b16 %v168
    %v267 = vunpack.c.h.b16 %v168
    %v268 = vunpack.c.l.b16 %v169
    %v269 = vunpack.c.h.b16 %v169
    %v270 = vunpack.c.l.b16 %v170
    %v271 = vunpack.c.h.b16 %v170
    %v272 = vunpack.c.l.b16 %v171
    %v273 = vunpack.c.h.b16 %v171
    %v274 = vunpack.c.l.b16 %v172
    %v275 = vunpack.c.h.b16 %v172
    %v276 = vunpack.c.l.b16 %v173
    %v277 = vunpack.c.h.b16 %v173
    %v278 = vunpack.c.l.b16 %v174
    %v279 = vunpack.c.h.b16 %v174
    %v280 = vunpack.c.l.b16 %v175
    %v281 = vunpack.c.h.b16 %v175
    %v282 = vunpack.c.l.b16 %v176
    %v283 = vunpack.c.h.b16 %v176
    %v284 = vunpack.c.l.b16 %v177
    %v285 = vunpack.c.h.b16 %v177
    %v286 = vpack.c.b16 %v224, %v222
    %v287 = vpack.c.b16 %v225, %v223
    %v288 = vpack.c.b16 %v228, %v226
    %v289 = vpack.c.b16 %v229, %v227
    %v290 = vpack.c.b16 %v232, %v230
    %v291 = vpack.c.b16 %v233, %v231
    %v292 = vpack.c.b16 %v236, %v234
    %v293 = vpack.c.b16 %v237, %v235
    %v294 = vpack.c.b16 %v240, %v238
    %v295 = vpack.c.b16 %v241, %v239
    %v296 = vpack.c.b16 %v244, %v242
    %v297 = vpack.c.b16 %v245, %v243
    %v298 = vpack.c.b16 %v248, %v246
    %v299 = vpack.c.b16 %v249, %v247
    %v300 = vpack.c.b16 %v252, %v250
    %v301 = vpack.c.b16 %v253, %v251
    %v302 = vpack.c.b16 %v256, %v254
    %v303 = vpack.c.b16 %v257, %v255
    %v304 = vpack.c.b16 %v260, %v258
    %v305 = vpack.c.b16 %v261, %v259
    %v306 = vpack.c.b16 %v264, %v262
    %v307 = vpack.c.b16 %v265, %v263
    %v308 = vpack.c.b16 %v268, %v266
    %v309 = vpack.c.b16 %v269, %v267
    %v310 = vpack.c.b16 %v272, %v270
    %v311 = vpack.c.b16 %v273, %v271
    %v312 = vpack.c.b16 %v276, %v274
    %v313 = vpack.c.b16 %v277, %v275
    %v314 = vpack.c.b16 %v280, %v278
    %v315 = vpack.c.b16 %v281, %v279
    %v316 = vpack.c.b16 %v284, %v282
    %v317 = vpack.c.b16 %v285, %v283
    %350 = vmatprep.subr.bf16.mxu0 %v301
    %351 = vmatpush1.bf16.msra.mxu0 %v300
    %352 = vmatprep.subr.bf16.mxu0 %v299
    %353 = vmatpush1.bf16.msra.mxu0 %v298
    %354 = vmatprep.subr.bf16.mxu0 %v297
    %355 = vmatpush1.bf16.msra.mxu0 %v296
    %356 = vmatprep.subr.bf16.mxu0 %v295
    %357 = vmatpush1.bf16.msra.mxu0 %v294
    %358 = vmatprep.subr.bf16.mxu0 %v293
    %359 = vmatpush1.bf16.msra.mxu0 %v292
    %360 = vmatprep.subr.bf16.mxu0 %v291
    %361 = vmatpush1.bf16.msra.mxu0 %v290
    %362 = vmatprep.subr.bf16.mxu0 %v289
    %363 = vmatpush1.bf16.msra.mxu0 %v288
    %364 = vmatprep.subr.bf16.mxu0 %v287
    %365 = vmatpush1.bf16.msra.mxu0 %v286
    %366 = vmatprep.subr.bf16.mxu0 %v317
    %367 = vmatpush2.bf16.msra.mxu0 %v316
    %368 = vmatprep.subr.bf16.mxu0 %v315
    %369 = vmatpush2.bf16.msra.mxu0 %v314
    %370 = vmatprep.subr.bf16.mxu0 %v313
    %371 = vmatpush2.bf16.msra.mxu0 %v312
    %372 = vmatprep.subr.bf16.mxu0 %v311
    %373 = vmatpush2.bf16.msra.mxu0 %v310
    %374 = vmatprep.subr.bf16.mxu0 %v309
    %375 = vmatpush2.bf16.msra.mxu0 %v308
    %376 = vmatprep.subr.bf16.mxu0 %v307
    %377 = vmatpush2.bf16.msra.mxu0 %v306
    %378 = vmatprep.subr.bf16.mxu0 %v305
    %379 = vmatpush2.bf16.msra.mxu0 %v304
    %380 = vmatprep.subr.bf16.mxu0 %v303
    %381 = vmatpush2.bf16.msra.mxu0 %v302
    %382 = vmatprep.mubr.bf16.mxu0 %v145
    %383 = vmatmul.mubr.bf16.gmra.mxu0 %v144
    %v384 = vpop.f32.mrf.mxu0
    %v385 = vadd.f32 %v183, %v384
    %v386 = vpop.f32.mrf.mxu0
    %v387 = vadd.f32 %v187, %v386
    %v388 = vpop.f32.mrf.mxu0
    %v389 = vpop.f32.mrf.mxu0
    %390 = vdwg.mxu0
    %vm391 = vcmask 1041408
    %v392 = vsel %vm391, %v385, -inf
    %v393 = vsel %vm391, %v387, -inf
    %v394 = vmax.f32 %v392, %v393
    %395 = vmax.xlane.f32.xlu0 %v394
    %v396 = vpop.xlane.xlu0 %395
    %v397 = vsub.f32 %v385, %v396
    %v398 = vsub.f32 %v387, %v396
    %v399 = vmul.f32 %v397, 1.442695
    %v400 = vpow.pop %v399
    %v401 = vmul.f32 %v398, 1.442695
    %v402 = vpow.pop %v401
    %v403 = vsel %vm391, %v400, 0.0
    %v404 = vsel %vm391, %v402, 0.0
    %v405 = vadd.f32 %v403, %v404
    %406 = vadd.xlane.f32.xlu0 %v405
    %v407 = vpop.xlane.xlu0 %406
    %v408 = vrcp.pop %v407
    %v409 = vmul.f32 %v400, %v408
    %v410 = vmul.f32 %v402, %v408
    %v413 = vcombine.low %v409, %v410
    %v415 = vunpack.c.l.s4 1983009808
    %v416 = vunpack.c.0.s8 %v415
    %v417 = vlaneseq
    %v418 = vshrl.u32 %v417, 7
    %v419 = vsub.s32 %v416, %v418
    %v420 = vrot.slane %v413, %v419
    %422 = vst [vmem:[#allocation8] sm:$0xf] %v420
    // Predicated region
    $region34: #{tpu_custom_call.1} parent=1 // pred_check
      _
    $region35: #{tpu_custom_call.1} parent=1 // pred_check_branch
      %424 = sbr.rel (0) target = $region37
    $region36: #{tpu_custom_call.1} parent=1 // pred_region
      %s426 = ssub.s32 64, 64
      %427 = vsyncadd [#allocation4], %s426
      %s429 = sshll.u32 [#allocation8], 4
      %s430 = int_to_ptr.vmem [resolvable:$true] %s429
      %432 = dma.vmem_to_hbm [thread:$0]  %s430, 64, %s5, [#allocation4]
    $region37: #{tpu_custom_call.1} parent=1 // pred_fallthru
      _
    // Predicated region
    $region38: #{tpu_custom_call.1} parent=1 // pred_check
      _
    $region39: #{tpu_custom_call.1} parent=1 // pred_check_branch
      %434 = sbr.rel (0) target = $region41
    $region40: #{tpu_custom_call.1} parent=1 // pred_region
      %435 = dma.done [#allocation4], 64
    $region41: #{tpu_custom_call.1} parent=1 // pred_fallthru
      _
    %436 = vsyncpa [#allocation3], 1
    %437 = vsyncpa [#allocation6], 1
    %438 = vsyncpa [#allocation4], 1

</llo_original>
